<compile_context>
chip_gen: v5e
topology: v5e:2x2
jax: 0.10.0
libtpu: 0.0.40
codegen_flags: <defaults>
</compile_context>

<pallas_src>
import jax
import jax.numpy as jnp
from jax.experimental import pallas as pl
from jax.experimental.pallas import tpu as pltpu


def cbow_kernel(ctx_ref, emb_ref, w_ref, b_ref, out_ref, mean_ref):
    # ctx_ref  : VMEM (B_pad, C)    int32   (resident across grid)
    # emb_ref  : VMEM (V_pad, D)    f32     (resident across grid)
    # w_ref    : VMEM (D, tv)       f32     (tile j of w_t)
    # b_ref    : VMEM (1, tv)       f32     (tile j of bias)
    # out_ref  : VMEM (B_pad, tv)   f32     (tile j of output)
    # mean_ref : VMEM (B_pad, D)    f32     scratch, persists across grid steps
    j = pl.program_id(0)
    B_pad, C = ctx_ref.shape
    V_pad = emb_ref.shape[0]

    # Compute the context mean once (grid step 0); reuse for every V tile.
    @pl.when(j == 0)
    def _():
        ctx = ctx_ref[...]                                             # (B_pad, C) i32
        # counts[b, v] = sum_c [ctx[b, c] == v] -- cheap VPU compares, C is tiny.
        lane_ids = jax.lax.broadcasted_iota(jnp.int32, (B_pad, V_pad), 1)
        counts = jnp.zeros((B_pad, V_pad), jnp.float32)
        for c in range(C):
            counts = counts + (ctx[:, c:c + 1] == lane_ids).astype(jnp.float32)
        # Gather + mean as one MXU matmul: (B_pad, V_pad) @ (V_pad, D).
        mean_ref[...] = jnp.dot(
            counts, emb_ref[...], preferred_element_type=jnp.float32
        ) * (1.0 / C)

    # Linear layer tile on the MXU: (B_pad, D) @ (D, tv) + (1, tv).
    out_ref[...] = (
        jnp.dot(mean_ref[...], w_ref[...], preferred_element_type=jnp.float32)
        + b_ref[...]
    )


def _round_up(x, m):
    return ((x + m - 1) // m) * m


def cbow_forward(context, emb_table, w_t, bias):
    B, C = context.shape
    V, D = emb_table.shape

    # Pad batch to a sublane multiple (>= 8) -> full-tile matmul LHS / stores.
    B_pad = max(8, _round_up(B, 8))
    ctx_p = jnp.zeros((B_pad, C), jnp.int32).at[:B].set(context.astype(jnp.int32))

    # Pad vocab to a lane multiple (128) and choose a V tile that divides it.
    tv_target = 512
    V_pad = _round_up(V, 128)
    if V_pad > tv_target:
        V_pad = _round_up(V, tv_target)
        tv = tv_target
    else:
        tv = V_pad
    num_v_tiles = V_pad // tv

    emb_p = jnp.zeros((V_pad, D), jnp.float32).at[:V].set(emb_table)
    w_p = jnp.zeros((D, V_pad), jnp.float32).at[:, :V].set(w_t)
    b_p = jnp.zeros((1, V_pad), jnp.float32).at[:, :V].set(bias)

    bytes_accessed = 4 * (
        ctx_p.size + emb_p.size + w_p.size + b_p.size + B_pad * V_pad
    )
    flops = 2 * B_pad * V_pad * D + 2 * B_pad * D * V_pad + B_pad * C * V_pad

    out = pl.pallas_call(
        cbow_kernel,
        out_shape=jax.ShapeDtypeStruct((B_pad, V_pad), jnp.float32),
        grid_spec=pltpu.PrefetchScalarGridSpec(
            num_scalar_prefetch=0,
            grid=(num_v_tiles,),
            in_specs=[
                pl.BlockSpec((B_pad, C), lambda j: (0, 0)),    # context (resident)
                pl.BlockSpec((V_pad, D), lambda j: (0, 0)),    # embedding table (resident)
                pl.BlockSpec((D, tv), lambda j: (0, j)),       # linear weight tile
                pl.BlockSpec((1, tv), lambda j: (0, j)),       # bias tile
            ],
            out_specs=pl.BlockSpec((B_pad, tv), lambda j: (0, j)),
            scratch_shapes=[pltpu.VMEM((B_pad, D), jnp.float32)],  # cached mean
        ),
        compiler_params=pltpu.CompilerParams(
            dimension_semantics=("arbitrary",),  # mean scratch carried across V tiles
        ),
        cost_estimate=pl.CostEstimate(
            flops=flops, transcendentals=0, bytes_accessed=bytes_accessed),
    )(ctx_p, emb_p, w_p, b_p)

    return out[:B, :V]


def cbow_reference(context, emb_table, w_t, bias):
    embedded = emb_table[context]          # (B, C, D)
    embedded = embedded.mean(axis=1)       # (B, D)
    return embedded @ w_t + bias           # (B, V)


if __name__ == "__main__":
    vocab_size = 128
    embedding_dim = 32
    batch = 4
    context_size = 6

    key = jax.random.PRNGKey(0)
    k_ctx, k_emb, k_w, k_b = jax.random.split(key, 4)

    # Deterministic synthetic parameters (no checkpoint load).
    context = jax.random.randint(
        k_ctx, (batch, context_size), 0, vocab_size, dtype=jnp.int32
    )
    emb_table = jax.random.normal(k_emb, (vocab_size, embedding_dim), jnp.float32) * 0.1
    # PyTorch nn.Linear weight is (vocab, emb_dim); store its transpose (emb_dim, vocab).
    w_t = jax.random.normal(k_w, (embedding_dim, vocab_size), jnp.float32) * 0.1
    bias = jax.random.normal(k_b, (1, vocab_size), jnp.float32) * 0.1

    out = cbow_forward(context, emb_table, w_t, bias)
    out = jax.block_until_ready(out)

    ref = cbow_reference(context, emb_table, w_t, bias)
    assert out.shape == (batch, vocab_size)
    assert jnp.allclose(out, ref, atol=1e-4, rtol=1e-4), "mismatch vs reference"

    print("KERNEL_OK")
</pallas_src>

<mosaic_0001>
module attributes {stable_mosaic.version = 11 : i64} {
  func.func @cbow_kernel(%arg0: i32, %arg1: memref<8x6xi32, #tpu.memory_space<vmem>>, %arg2: memref<128x32xf32, #tpu.memory_space<vmem>>, %arg3: memref<32x128xf32, #tpu.memory_space<vmem>>, %arg4: memref<1x128xf32, #tpu.memory_space<vmem>>, %arg5: memref<8x128xf32, #tpu.memory_space<vmem>>, %arg6: memref<8x32xf32, #tpu.memory_space<vmem>>) attributes {dimension_semantics = [#tpu.dimension_semantics<arbitrary>], iteration_bounds = array<i64: 1>, scalar_prefetch = 0 : i64, scratch_operands = 1 : i64, tpu.core_type = #tpu.core_type<tc>, window_params = [{pipeline_mode = #tpu.pipeline_mode<synchronous>, transform_indices = @transform_0, window_bounds = array<i64: 8, 6>}, {pipeline_mode = #tpu.pipeline_mode<synchronous>, transform_indices = @transform_1, window_bounds = array<i64: 128, 32>}, {transform_indices = @transform_2, window_bounds = array<i64: 32, 128>}, {transform_indices = @transform_3, window_bounds = array<i64: 1, 128>}, {transform_indices = @transform_4, window_bounds = array<i64: 8, 128>}]} {
    %c0_i32 = arith.constant 0 : i32
    %0 = arith.cmpi eq, %arg0, %c0_i32 : i32
    %1 = arith.extui %0 : i1 to i32
    %c0_i32_0 = arith.constant 0 : i32
    %2 = arith.cmpi ne, %1, %c0_i32_0 : i32
    scf.if %2 {
      %c0_8 = arith.constant 0 : index
      %c0_9 = arith.constant 0 : index
      %10 = vector.load %arg1[%c0_8, %c0_9] : memref<8x6xi32, #tpu.memory_space<vmem>>, vector<8x6xi32>
      %11 = tpu.iota {dimensions = array<i32: 1>} : vector<8x128xi32>
      %cst_10 = arith.constant 0.000000e+00 : f32
      %12 = vector.broadcast %cst_10 : f32 to vector<8x128xf32>
      %13 = vector.extract_strided_slice %10 {offsets = [0, 0], sizes = [8, 1], strides = [1, 1]} : vector<8x6xi32> to vector<8x1xi32>
      %14 = vector.broadcast %13 : vector<8x1xi32> to vector<8x128xi32>
      %15 = arith.cmpi eq, %14, %11 : vector<8x128xi32>
      %16 = arith.extui %15 : vector<8x128xi1> to vector<8x128xi32>
      %17 = arith.sitofp %16 : vector<8x128xi32> to vector<8x128xf32>
      %18 = arith.addf %12, %17 : vector<8x128xf32>
      %19 = vector.extract_strided_slice %10 {offsets = [0, 1], sizes = [8, 1], strides = [1, 1]} : vector<8x6xi32> to vector<8x1xi32>
      %20 = vector.broadcast %19 : vector<8x1xi32> to vector<8x128xi32>
      %21 = arith.cmpi eq, %20, %11 : vector<8x128xi32>
      %22 = arith.extui %21 : vector<8x128xi1> to vector<8x128xi32>
      %23 = arith.sitofp %22 : vector<8x128xi32> to vector<8x128xf32>
      %24 = arith.addf %18, %23 : vector<8x128xf32>
      %25 = vector.extract_strided_slice %10 {offsets = [0, 2], sizes = [8, 1], strides = [1, 1]} : vector<8x6xi32> to vector<8x1xi32>
      %26 = vector.broadcast %25 : vector<8x1xi32> to vector<8x128xi32>
      %27 = arith.cmpi eq, %26, %11 : vector<8x128xi32>
      %28 = arith.extui %27 : vector<8x128xi1> to vector<8x128xi32>
      %29 = arith.sitofp %28 : vector<8x128xi32> to vector<8x128xf32>
      %30 = arith.addf %24, %29 : vector<8x128xf32>
      %31 = vector.extract_strided_slice %10 {offsets = [0, 3], sizes = [8, 1], strides = [1, 1]} : vector<8x6xi32> to vector<8x1xi32>
      %32 = vector.broadcast %31 : vector<8x1xi32> to vector<8x128xi32>
      %33 = arith.cmpi eq, %32, %11 : vector<8x128xi32>
      %34 = arith.extui %33 : vector<8x128xi1> to vector<8x128xi32>
      %35 = arith.sitofp %34 : vector<8x128xi32> to vector<8x128xf32>
      %36 = arith.addf %30, %35 : vector<8x128xf32>
      %37 = vector.extract_strided_slice %10 {offsets = [0, 4], sizes = [8, 1], strides = [1, 1]} : vector<8x6xi32> to vector<8x1xi32>
      %38 = vector.broadcast %37 : vector<8x1xi32> to vector<8x128xi32>
      %39 = arith.cmpi eq, %38, %11 : vector<8x128xi32>
      %40 = arith.extui %39 : vector<8x128xi1> to vector<8x128xi32>
      %41 = arith.sitofp %40 : vector<8x128xi32> to vector<8x128xf32>
      %42 = arith.addf %36, %41 : vector<8x128xf32>
      %43 = vector.extract_strided_slice %10 {offsets = [0, 5], sizes = [8, 1], strides = [1, 1]} : vector<8x6xi32> to vector<8x1xi32>
      %44 = vector.broadcast %43 : vector<8x1xi32> to vector<8x128xi32>
      %45 = arith.cmpi eq, %44, %11 : vector<8x128xi32>
      %46 = arith.extui %45 : vector<8x128xi1> to vector<8x128xi32>
      %47 = arith.sitofp %46 : vector<8x128xi32> to vector<8x128xf32>
      %48 = arith.addf %42, %47 : vector<8x128xf32>
      %c0_11 = arith.constant 0 : index
      %c0_12 = arith.constant 0 : index
      %49 = vector.load %arg2[%c0_11, %c0_12] : memref<128x32xf32, #tpu.memory_space<vmem>>, vector<128x32xf32>
      %cst_13 = arith.constant dense<0.000000e+00> : vector<8x32xf32>
      %50 = tpu.matmul %48, %49, %cst_13 {dimension_numbers = #tpu.dot_dimension_numbers<[1], [0], [0], [1], [0, 0, 1, 1], [], []>} : vector<8x128xf32>, vector<128x32xf32>, vector<8x32xf32> -> vector<8x32xf32>
      %cst_14 = arith.constant 0.166666672 : f32
      %51 = vector.broadcast %cst_14 : f32 to vector<8x32xf32>
      %52 = arith.mulf %50, %51 : vector<8x32xf32>
      %c0_15 = arith.constant 0 : index
      %c0_16 = arith.constant 0 : index
      %53 = vector.load %arg6[%c0_15, %c0_16] : memref<8x32xf32, #tpu.memory_space<vmem>>, vector<8x32xf32>
      tpu.vector_store %arg6[%c0_15, %c0_16], %52 {strides = array<i32>} : memref<8x32xf32, #tpu.memory_space<vmem>>, vector<8x32xf32>,
    } else {
    }
    %c0 = arith.constant 0 : index
    %c0_1 = arith.constant 0 : index
    %3 = vector.load %arg6[%c0, %c0_1] : memref<8x32xf32, #tpu.memory_space<vmem>>, vector<8x32xf32>
    %c0_2 = arith.constant 0 : index
    %c0_3 = arith.constant 0 : index
    %4 = vector.load %arg3[%c0_2, %c0_3] : memref<32x128xf32, #tpu.memory_space<vmem>>, vector<32x128xf32>
    %cst = arith.constant dense<0.000000e+00> : vector<8x128xf32>
    %5 = tpu.matmul %3, %4, %cst {dimension_numbers = #tpu.dot_dimension_numbers<[1], [0], [0], [1], [0, 0, 1, 1], [], []>} : vector<8x32xf32>, vector<32x128xf32>, vector<8x128xf32> -> vector<8x128xf32>
    %c0_4 = arith.constant 0 : index
    %c0_5 = arith.constant 0 : index
    %6 = vector.load %arg4[%c0_4, %c0_5] : memref<1x128xf32, #tpu.memory_space<vmem>>, vector<1x128xf32>
    %7 = vector.broadcast %6 : vector<1x128xf32> to vector<8x128xf32>
    %8 = arith.addf %5, %7 : vector<8x128xf32>
    %c0_6 = arith.constant 0 : index
    %c0_7 = arith.constant 0 : index
    %9 = vector.load %arg5[%c0_6, %c0_7] : memref<8x128xf32, #tpu.memory_space<vmem>>, vector<8x128xf32>
    tpu.vector_store %arg5[%c0_6, %c0_7], %8 {strides = array<i32>} : memref<8x128xf32, #tpu.memory_space<vmem>>, vector<8x128xf32>,
    return
  }
  func.func @transform_0(%arg0: i32) -> (i32, i32) {
    %c0_i32 = arith.constant 0 : i32
    %c0_i32_0 = arith.constant 0 : i32
    %c0_i32_1 = arith.constant 0 : i32
    return %c0_i32, %c0_i32_0 : i32, i32
  }
  func.func @transform_1(%arg0: i32) -> (i32, i32) {
    %c0_i32 = arith.constant 0 : i32
    %c0_i32_0 = arith.constant 0 : i32
    %c0_i32_1 = arith.constant 0 : i32
    return %c0_i32, %c0_i32_0 : i32, i32
  }
  func.func @transform_2(%arg0: i32) -> (i32, i32) {
    %c0_i32 = arith.constant 0 : i32
    %c0_i32_0 = arith.constant 0 : i32
    return %c0_i32, %arg0 : i32, i32
  }
  func.func @transform_3(%arg0: i32) -> (i32, i32) {
    %c0_i32 = arith.constant 0 : i32
    %c0_i32_0 = arith.constant 0 : i32
    return %c0_i32, %arg0 : i32, i32
  }
  func.func @transform_4(%arg0: i32) -> (i32, i32) {
    %c0_i32 = arith.constant 0 : i32
    %c0_i32_0 = arith.constant 0 : i32
    return %c0_i32, %arg0 : i32, i32
  }
}

</mosaic_0001>

<llo_original>
// kernel: tpu_custom_call.1
$region0: #{tpu_custom_call.1}
  #allocation0 [shape = 'u32[]', space=smem, size = 0x4, offset = 0x4, fixed_abs, tag = 'smem constant byte address 0x4 - core index']
  #allocation1 [shape = 'u32[72,128]{1,0:T(1,128)}', space=vmem, size = 0x9000, scoped, tag = 'internal scratch']
  #allocation2 [shape = 'f32[8,32]{1,0:T(8,128)}', space=vmem, size = 0x1000, scoped, tag = 'scratch operand']
  %s0 = inlined_call_operand.vmem [shape: s32[8,6], index: 0, kind: input, shape index: {}]
  %s1 = inlined_call_operand.vmem [shape: f32[128,32], index: 1, kind: input, shape index: {}]
  %s2 = inlined_call_operand.vmem [shape: f32[32,128], index: 2, kind: input, shape index: {}]
  %s3 = inlined_call_operand.vmem [shape: f32[1,128], index: 3, kind: input, shape index: {}]
  %s4 = inlined_call_operand.hbm [shape: f32[8,128], index: 4, kind: output, shape index: {}]
  %s5 = sld [smem:[#allocation0]]
  $region30: #{tpu_custom_call.1} parent=0
    _
  %s7 = ssub.s32 1, %s5
  %s8 = scalar_select 0, %s7, %s5
  $region1: #{tpu_custom_call.1} parent=0
    #allocation3 [shape = 'u8[4096]{0}', space=vmem, size = 0x1000, scoped, tag = 'output window, operand 0, single buffered']
    #allocation4 [shape = 's32[1]{0}', space=sflag, size = 0x4, scoped, tag = 'scoped memory for tpu_custom_call.1']
    %9 = vsyncpa [#allocation4], 0
    // Predicated region
    $region2: #{tpu_custom_call.1} parent=1 // pred_check
      _
    $region3: #{tpu_custom_call.1} parent=1 // pred_check_branch
      %11 = sbr.rel (0) target = $region5
    $region4: #{tpu_custom_call.1} parent=1 // pred_region
      _
    $region5: #{tpu_custom_call.1} parent=1 // pred_fallthru
      _
    // Predicated region
    $region6: #{tpu_custom_call.1} parent=1 // pred_check
      _
    $region7: #{tpu_custom_call.1} parent=1 // pred_check_branch
      %13 = sbr.rel (0) target = $region9
    $region8: #{tpu_custom_call.1} parent=1 // pred_region
      _
    $region9: #{tpu_custom_call.1} parent=1 // pred_fallthru
      _
    // Predicated region
    $region10: #{tpu_custom_call.1} parent=1 // pred_check
      _
    $region11: #{tpu_custom_call.1} parent=1 // pred_check_branch
      %15 = sbr.rel (0) target = $region13
    $region12: #{tpu_custom_call.1} parent=1 // pred_region
      _
    $region13: #{tpu_custom_call.1} parent=1 // pred_fallthru
      _
    // Predicated region
    $region14: #{tpu_custom_call.1} parent=1 // pred_check
      _
    $region15: #{tpu_custom_call.1} parent=1 // pred_check_branch
      %17 = sbr.rel (0) target = $region17
    $region16: #{tpu_custom_call.1} parent=1 // pred_region
      _
    $region17: #{tpu_custom_call.1} parent=1 // pred_fallthru
      _
    %p18 = scmp.eq.s32.totalorder 0, 0
    // Predicated region
    $region18: #{tpu_custom_call.1} parent=1 // pred_check
      %p19 = pneg %p18
    $region19: #{tpu_custom_call.1} parent=1 // pred_check_branch
      %21 = sbr.rel (%p19) target = $region21
    $region20: #{tpu_custom_call.1} parent=1 // pred_region
      %v22 = vld [vmem:[%s0] sm:$0xff]
      %v23 = vlaneseq
      %v24 = vand.u32 %v23, 127
      %25 = vset.pattern.permute.xlu0 0
      %26 = vperm.xlu0 %25, %v22
      %v27 = vpop.permute.xlu0 %26
      %vm28 = vcmp.eq.s32.totalorder %v27, %v24
      %v29 = vsel %vm28, 1, 0
      %v30 = vcvt.s32.f32 %v29
      %v31 = vadd.f32 %v30, 0.0
      %32 = vset.pattern.permute.xlu0 1
      %33 = vperm.xlu0 %32, %v22
      %v34 = vpop.permute.xlu0 %33
      %vm35 = vcmp.eq.s32.totalorder %v34, %v24
      %v36 = vsel %vm35, 1, 0
      %v37 = vcvt.s32.f32 %v36
      %v38 = vadd.f32 %v31, %v37
      %39 = vset.pattern.permute.xlu0 2
      %40 = vperm.xlu0 %39, %v22
      %v41 = vpop.permute.xlu0 %40
      %vm42 = vcmp.eq.s32.totalorder %v41, %v24
      %v43 = vsel %vm42, 1, 0
      %v44 = vcvt.s32.f32 %v43
      %v45 = vadd.f32 %v38, %v44
      %46 = vset.pattern.permute.xlu0 3
      %47 = vperm.xlu0 %46, %v22
      %v48 = vpop.permute.xlu0 %47
      %vm49 = vcmp.eq.s32.totalorder %v48, %v24
      %v50 = vsel %vm49, 1, 0
      %v51 = vcvt.s32.f32 %v50
      %v52 = vadd.f32 %v45, %v51
      %53 = vset.pattern.permute.xlu0 4
      %54 = vperm.xlu0 %53, %v22
      %v55 = vpop.permute.xlu0 %54
      %vm56 = vcmp.eq.s32.totalorder %v55, %v24
      %v57 = vsel %vm56, 1, 0
      %v58 = vcvt.s32.f32 %v57
      %v59 = vadd.f32 %v52, %v58
      %60 = vset.pattern.permute.xlu0 5
      %61 = vperm.xlu0 %60, %v22
      %v62 = vpop.permute.xlu0 %61
      %vm63 = vcmp.eq.s32.totalorder %v62, %v24
      %v64 = vsel %vm63, 1, 0
      %v65 = vcvt.s32.f32 %v64
      %v66 = vadd.f32 %v59, %v65
      %v67 = vld [vmem:[%s1] sm:$0xff]
      %v68 = vld [vmem:[%s1 + $0x8] sm:$0xff]
      %v69 = vld [vmem:[%s1 + $0x10] sm:$0xff]
      %v70 = vld [vmem:[%s1 + $0x18] sm:$0xff]
      %v71 = vld [vmem:[%s1 + $0x20] sm:$0xff]
      %v72 = vld [vmem:[%s1 + $0x28] sm:$0xff]
      %v73 = vld [vmem:[%s1 + $0x30] sm:$0xff]
      %v74 = vld [vmem:[%s1 + $0x38] sm:$0xff]
      %v75 = vld [vmem:[%s1 + $0x40] sm:$0xff]
      %v76 = vld [vmem:[%s1 + $0x48] sm:$0xff]
      %v77 = vld [vmem:[%s1 + $0x50] sm:$0xff]
      %v78 = vld [vmem:[%s1 + $0x58] sm:$0xff]
      %v79 = vld [vmem:[%s1 + $0x60] sm:$0xff]
      %v80 = vld [vmem:[%s1 + $0x68] sm:$0xff]
      %v81 = vld [vmem:[%s1 + $0x70] sm:$0xff]
      %v82 = vld [vmem:[%s1 + $0x78] sm:$0xff]
      %83 = vmatpush.msra.mxu0 %v82
      %84 = vmatpush.msra.mxu0 %v81
      %85 = vmatpush.msra.mxu0 %v80
      %86 = vmatpush.msra.mxu0 %v79
      %87 = vmatpush.msra.mxu0 %v78
      %88 = vmatpush.msra.mxu0 %v77
      %89 = vmatpush.msra.mxu0 %v76
      %90 = vmatpush.msra.mxu0 %v75
      %91 = vmatpush.msra.mxu0 %v74
      %92 = vmatpush.msra.mxu0 %v73
      %93 = vmatpush.msra.mxu0 %v72
      %94 = vmatpush.msra.mxu0 %v71
      %95 = vmatpush.msra.mxu0 %v70
      %96 = vmatpush.msra.mxu0 %v69
      %97 = vmatpush.msra.mxu0 %v68
      %98 = vmatpush.msra.mxu0 %v67
      %99 = vmatmul.f32.gmra.mxu0 %v66
      %v100 = vpop.f32.mrf.mxu0
      %v101 = vadd.f32 0.0, %v100
      %102 = vdwg.mxu0
      %v103 = vmul.f32 %v101, 0.16666667
      %vm104 = vcmask 261120
      %105 = vst.msk [vmem:[#allocation2] sm:$0xff] %vm104, %v103
    $region21: #{tpu_custom_call.1} parent=1 // pred_fallthru
      _
    %v106 = vld [vmem:[#allocation2] sm:$0xff]
    %v107 = vld [vmem:[%s2] sm:$0xff]
    %v108 = vld [vmem:[%s2 + $0x8] sm:$0xff]
    %v109 = vld [vmem:[%s2 + $0x10] sm:$0xff]
    %v110 = vld [vmem:[%s2 + $0x18] sm:$0xff]
    %v111 = vld [vmem:[%s3] sm:$0x1]
    %v113 = vperm.slane %v111, 0
    %vm115 = vcmask 261120
    %v117 = vsel %vm115, %v106, 0
    %119 = vmatpush.msra.mxu0 0.0
    %120 = vmatpush.msra.mxu0 0.0
    %121 = vmatpush.msra.mxu0 0.0
    %122 = vmatpush.msra.mxu0 0.0
    %123 = vmatpush.msra.mxu0 0.0
    %124 = vmatpush.msra.mxu0 0.0
    %125 = vmatpush.msra.mxu0 0.0
    %126 = vmatpush.msra.mxu0 0.0
    %127 = vmatpush.msra.mxu0 0.0
    %128 = vmatpush.msra.mxu0 0.0
    %129 = vmatpush.msra.mxu0 0.0
    %130 = vmatpush.msra.mxu0 0.0
    %131 = vmatpush.msra.mxu0 %v110
    %132 = vmatpush.msra.mxu0 %v109
    %133 = vmatpush.msra.mxu0 %v108
    %134 = vmatpush.msra.mxu0 %v107
    %135 = vmatmul.f32.gmra.mxu0 %v117
    %v136 = vpop.f32.mrf.mxu0
    %v137 = vadd.f32 %v113, %v136
    %138 = vdwg.mxu0
    %139 = vst [vmem:[#allocation3] sm:$0xff] %v137
    // Predicated region
    $region22: #{tpu_custom_call.1} parent=1 // pred_check
      _
    $region23: #{tpu_custom_call.1} parent=1 // pred_check_branch
      %141 = sbr.rel (0) target = $region25
    $region24: #{tpu_custom_call.1} parent=1 // pred_region
      %143 = vsyncadd [#allocation4], 0
      %s145 = sshll.u32 [#allocation3], 4
      %s146 = int_to_ptr.vmem [resolvable:$true] %s145
      %s147 = sshll.u32 %s4, 4
      %s148 = int_to_ptr.hbm [resolvable:$true] %s147
      %150 = dma.vmem_to_hbm [thread:$0]  %s146, 128, %s148, [#allocation4]
    $region25: #{tpu_custom_call.1} parent=1 // pred_fallthru
      _
    // Predicated region
    $region26: #{tpu_custom_call.1} parent=1 // pred_check
      _
    $region27: #{tpu_custom_call.1} parent=1 // pred_check_branch
      %152 = sbr.rel (0) target = $region29
    $region28: #{tpu_custom_call.1} parent=1 // pred_region
      %154 = dma.done [#allocation4], 128
    $region29: #{tpu_custom_call.1} parent=1 // pred_fallthru
      _
    %155 = vsyncpa [#allocation4], 1

</llo_original>
